<compile_context>
chip_gen: v7x
topology: tpu7x:2x2x1
jax: 0.10.0
libtpu: 0.0.40
codegen_flags: <defaults>
</compile_context>

<pallas_src>
import jax
import jax.numpy as jnp
from jax.experimental import pallas as pl
from jax.experimental.pallas import tpu as pltpu


def _sobel_kernel(img_ref, out_ref):
    # img_ref: (TB, H, W) f32   out_ref: (TB, H-2, W-2) f32
    img = img_ref[...]
    _, H, W = img.shape
    Ho, Wo = H - 2, W - 2

    top = img[:, 0:Ho, :]
    mid = img[:, 1:1 + Ho, :]
    bot = img[:, 2:2 + Ho, :]

    # Gx = (1,2,1)^T (x) (2,0,-2)   Gy = (1,0,-1)^T (x) (2,4,2)  (separable)
    # Compute a (killing s) before building d/b to keep peak live planes low.
    s = top + 2.0 * mid + bot                      # vertical smoothing (Gx)
    a = s[:, :, 0:Wo] - s[:, :, 2:2 + Wo]          # Gx / 2
    d = top - bot                                  # vertical difference (Gy)
    b = d[:, :, 0:Wo] + 2.0 * d[:, :, 1:1 + Wo] + d[:, :, 2:2 + Wo]  # Gy / 2

    # |G| = sqrt((2a)^2 + (2b)^2) = 2*sqrt(a^2 + b^2)  (outer *2 folded once)
    out_ref[...] = 2.0 * jnp.sqrt(a * a + b * b)


def _plan_tiles(N, H, W):
    """Pick images-per-grid-step (TB) and a VMEM limit, generation-aware."""
    try:
        cap = int(getattr(pltpu.get_tpu_info(), "vmem_capacity_bytes",
                          128 << 20))
    except Exception:  # pragma: no cover - non-TPU / query unavailable
        cap = 128 << 20

    if cap <= (64 << 20):          # v7x-class: 64 MiB VMEM per TensorCore
        target_bytes = 2 << 20
        base_limit = 40 << 20
    else:                          # v5e / v6e: 128 MiB VMEM
        target_bytes = 4 << 20
        base_limit = 64 << 20

    # Keep at least min(N, 4) grid steps so the pipeline has iterations to
    # overlap and the "parallel" axis can be sharded across TensorCores.
    max_tb = max(1, N // min(N, 4))
    divisors = [d for d in range(1, max_tb + 1) if N % d == 0]
    fitting = [d for d in divisors if d * H * W * 4 <= target_bytes]
    tb = max(fitting) if fitting else 1

    # Footprint ~= 2x double-buffered input block + 2x output block + ~6
    # materialized full-tile temporaries (top/mid/bot, s, d, a, b, shifted
    # slices) -> budget ~12x the tile, capped below physical VMEM.
    tile_bytes = tb * H * W * 4
    vmem_limit = min(int(cap * 3 // 4),
                     max(base_limit, 12 * tile_bytes + (4 << 20)))
    return tb, vmem_limit


def sobel(img):
    """img: (N, 1, H, W) float -> (N, 1, H-2, W-2) float32."""
    N, C, H, W = img.shape
    assert C == 1, "Sobel module is defined for a single input channel"
    assert H >= 3 and W >= 3, "valid 3x3 convolution needs H, W >= 3"
    Ho, Wo = H - 2, W - 2

    x = img[:, 0].astype(jnp.float32)          # (N, H, W); size-1 squeeze only

    TB, vmem_limit = _plan_tiles(N, H, W)
    grid = (N // TB,)

    out = pl.pallas_call(
        _sobel_kernel,
        out_shape=jax.ShapeDtypeStruct((N, Ho, Wo), jnp.float32),
        grid=grid,
        # Last two block dims equal the full array dims, so no (8, 128)
        # divisibility requirement and no wrapper-side padding.
        in_specs=[pl.BlockSpec((TB, H, W), lambda b: (b, 0, 0))],
        out_specs=pl.BlockSpec((TB, Ho, Wo), lambda b: (b, 0, 0)),
        compiler_params=pltpu.CompilerParams(
            dimension_semantics=("parallel",),
            vmem_limit_bytes=vmem_limit,
        ),
    )(x)

    return out[:, None, :, :]                  # (N, 1, Ho, Wo); free unsqueeze


def _sobel_ref(img):
    """Pure-JAX reference (same semantics as the PyTorch module)."""
    gx = jnp.array([[2.0, 0.0, -2.0],
                    [4.0, 0.0, -4.0],
                    [2.0, 0.0, -2.0]], jnp.float32)
    gy = jnp.array([[2.0, 4.0, 2.0],
                    [0.0, 0.0, 0.0],
                    [-2.0, -4.0, -2.0]], jnp.float32)
    w = jnp.stack([gx, gy])[:, None, :, :]     # (2, 1, 3, 3) OIHW
    y = jax.lax.conv_general_dilated(
        img.astype(jnp.float32), w, window_strides=(1, 1), padding="VALID",
        dimension_numbers=("NCHW", "OIHW", "NCHW"))
    return jnp.sqrt(jnp.sum(y * y, axis=1, keepdims=True))


if __name__ == "__main__":
    key = jax.random.PRNGKey(0)

    # Case 1: small batch (grid of 2 single-image steps).
    img1 = jax.random.normal(key, (2, 1, 16, 16), dtype=jnp.float32)
    out1 = jax.block_until_ready(sobel(img1))
    ref1 = jax.block_until_ready(_sobel_ref(img1))
    assert out1.shape == (2, 1, 14, 14), out1.shape
    assert jnp.allclose(out1, ref1, atol=1e-4, rtol=1e-4), \
        float(jnp.max(jnp.abs(out1 - ref1)))

    # Case 2: larger batch / ragged width (TB > 1, >= 4 grid steps).
    img2 = jax.random.normal(jax.random.PRNGKey(1), (8, 1, 24, 40),
                             dtype=jnp.float32)
    out2 = jax.block_until_ready(sobel(img2))
    ref2 = jax.block_until_ready(_sobel_ref(img2))
    assert out2.shape == (8, 1, 22, 38), out2.shape
    assert jnp.allclose(out2, ref2, atol=1e-4, rtol=1e-4), \
        float(jnp.max(jnp.abs(out2 - ref2)))

    print("KERNEL_OK")
</pallas_src>

<mosaic_0001>
module attributes {stable_mosaic.version = 11 : i64} {
  func.func @_sobel_kernel(%arg0: i32, %arg1: memref<1x16x16xf32, #tpu.memory_space<vmem>>, %arg2: memref<1x14x14xf32, #tpu.memory_space<vmem>>) attributes {dimension_semantics = [#tpu.dimension_semantics<parallel>], iteration_bounds = array<i64: 2>, scalar_prefetch = 0 : i64, scratch_operands = 0 : i64, tpu.core_type = #tpu.core_type<tc>, window_params = [{transform_indices = @transform_0, window_bounds = array<i64: 1, 16, 16>}, {transform_indices = @transform_1, window_bounds = array<i64: 1, 14, 14>}]} {
    %c0 = arith.constant 0 : index
    %c0_0 = arith.constant 0 : index
    %c0_1 = arith.constant 0 : index
    %0 = vector.load %arg1[%c0, %c0_0, %c0_1] : memref<1x16x16xf32, #tpu.memory_space<vmem>>, vector<1x16x16xf32>
    %1 = vector.extract_strided_slice %0 {offsets = [0, 0, 0], sizes = [1, 14, 16], strides = [1, 1, 1]} : vector<1x16x16xf32> to vector<1x14x16xf32>
    %2 = vector.extract_strided_slice %0 {offsets = [0, 1, 0], sizes = [1, 14, 16], strides = [1, 1, 1]} : vector<1x16x16xf32> to vector<1x14x16xf32>
    %3 = vector.extract_strided_slice %0 {offsets = [0, 2, 0], sizes = [1, 14, 16], strides = [1, 1, 1]} : vector<1x16x16xf32> to vector<1x14x16xf32>
    %cst = arith.constant 2.000000e+00 : f32
    %4 = vector.broadcast %cst : f32 to vector<1x14x16xf32>
    %5 = arith.mulf %4, %2 : vector<1x14x16xf32>
    %6 = arith.addf %1, %5 : vector<1x14x16xf32>
    %7 = arith.addf %6, %3 : vector<1x14x16xf32>
    %8 = vector.extract_strided_slice %7 {offsets = [0, 0, 0], sizes = [1, 14, 14], strides = [1, 1, 1]} : vector<1x14x16xf32> to vector<1x14x14xf32>
    %9 = vector.extract_strided_slice %7 {offsets = [0, 0, 2], sizes = [1, 14, 14], strides = [1, 1, 1]} : vector<1x14x16xf32> to vector<1x14x14xf32>
    %10 = arith.subf %8, %9 : vector<1x14x14xf32>
    %11 = arith.subf %1, %3 : vector<1x14x16xf32>
    %12 = vector.extract_strided_slice %11 {offsets = [0, 0, 0], sizes = [1, 14, 14], strides = [1, 1, 1]} : vector<1x14x16xf32> to vector<1x14x14xf32>
    %13 = vector.extract_strided_slice %11 {offsets = [0, 0, 1], sizes = [1, 14, 14], strides = [1, 1, 1]} : vector<1x14x16xf32> to vector<1x14x14xf32>
    %cst_2 = arith.constant 2.000000e+00 : f32
    %14 = vector.broadcast %cst_2 : f32 to vector<1x14x14xf32>
    %15 = arith.mulf %14, %13 : vector<1x14x14xf32>
    %16 = arith.addf %12, %15 : vector<1x14x14xf32>
    %17 = vector.extract_strided_slice %11 {offsets = [0, 0, 2], sizes = [1, 14, 14], strides = [1, 1, 1]} : vector<1x14x16xf32> to vector<1x14x14xf32>
    %18 = arith.addf %16, %17 : vector<1x14x14xf32>
    %19 = arith.mulf %10, %10 : vector<1x14x14xf32>
    %20 = arith.mulf %18, %18 : vector<1x14x14xf32>
    %21 = arith.addf %19, %20 : vector<1x14x14xf32>
    %22 = math.sqrt %21 : vector<1x14x14xf32>
    %cst_3 = arith.constant 2.000000e+00 : f32
    %23 = vector.broadcast %cst_3 : f32 to vector<1x14x14xf32>
    %24 = arith.mulf %23, %22 : vector<1x14x14xf32>
    %c0_4 = arith.constant 0 : index
    %c0_5 = arith.constant 0 : index
    %c0_6 = arith.constant 0 : index
    %25 = vector.load %arg2[%c0_4, %c0_5, %c0_6] : memref<1x14x14xf32, #tpu.memory_space<vmem>>, vector<1x14x14xf32>
    tpu.vector_store %arg2[%c0_4, %c0_5, %c0_6], %24 {strides = array<i32>} : memref<1x14x14xf32, #tpu.memory_space<vmem>>, vector<1x14x14xf32>,
    return
  }
  func.func @transform_0(%arg0: i32) -> (i32, i32, i32) {
    %c0_i32 = arith.constant 0 : i32
    %c0_i32_0 = arith.constant 0 : i32
    %c0_i32_1 = arith.constant 0 : i32
    return %arg0, %c0_i32, %c0_i32_0 : i32, i32, i32
  }
  func.func @transform_1(%arg0: i32) -> (i32, i32, i32) {
    %c0_i32 = arith.constant 0 : i32
    %c0_i32_0 = arith.constant 0 : i32
    %c0_i32_1 = arith.constant 0 : i32
    return %arg0, %c0_i32, %c0_i32_0 : i32, i32, i32
  }
}

</mosaic_0001>

<llo_original>
// kernel: tpu_custom_call.1
$region0: #{tpu_custom_call.1}
  #allocation0 [shape = 'u32[]', space=smem, size = 0x4, offset = 0x4, fixed_abs, tag = 'smem constant byte address 0x4 - core index']
  #allocation1 [shape = 'u32[144,128]{1,0:T(1,128)}', space=vmem, size = 0x12000, scoped, tag = 'internal scratch']
  %s0 = inlined_call_operand.hbm [shape: f32[2,16,16], index: 0, kind: input, shape index: {}]
  %s1 = inlined_call_operand.hbm [shape: f32[2,14,14], index: 1, kind: output, shape index: {}]
  %s2 = sld [smem:[#allocation0]]
  $region41: #{tpu_custom_call.1} parent=0
    _
  %s4 = ssub.s32 1, %s2
  %s5 = scalar_select 0, %s4, %s2
  $region1: #{tpu_custom_call.1} parent=0
    #allocation2 [shape = 'u8[16384]{0}', space=vmem, size = 0x4000, scoped, tag = 'input window, operand 0']
    #allocation3 [shape = 's32[2]{0}', space=sflag, size = 0x8, scoped, tag = 'scoped memory for tpu_custom_call.1']
    #allocation4 [shape = 's32[2]{0}', space=sflag, size = 0x8, scoped, tag = 'scoped memory for tpu_custom_call.1']
    #allocation5 [shape = 'u8[16384]{0}', space=vmem, size = 0x4000, scoped, tag = 'output window, operand 0']
    %6 = vsyncpa [#allocation3], 0
    %s7 = scalar_lea.sflag [#allocation3], 1
    %8 = vsyncpa %s7, 0
    %9 = vsyncpa [#allocation4], 0
    %s10 = scalar_lea.sflag [#allocation4], 1
    %11 = vsyncpa %s10, 0
    loop: start=0, step=1, limit=4
    $region2: #{tpu_custom_call.1} parent=1 // loop_pre_header
      _
    $region3: #{tpu_custom_call.1} parent=1 // loop_header
      %s13 = sphi 0, %s17
      %p14 = scmp.ge.s32.totalorder %s13, 4
      %s23 = sphi 0, %s25
      %s26 = sphi 0, %s23
      %s27 = sphi 0, %s26
      %s43 = sphi 0, %s27
      %s49 = sphi 0, %s51
      %s52 = sphi 0, %s49
      %s53 = sphi 0, %s52
      %s69 = sphi 0, %s53
    $region4: #{tpu_custom_call.1} parent=1 // loop_header_branch
      %16 = sbr.rel (%p14) target = $region8
    $region5: #{tpu_custom_call.1} parent=1 // loop_body
      %s18 = ssub.s32 %s13, 1
      %s19 = ssub.s32 %s13, 2
      %s20 = sadd.s32 %s13, 1
      %s21 = ssub.s32 %s13, %s20
      %p22 = scmp.eq.s32.totalorder %s21, 0
      %s24 = sadd.s32 %s23, 1
      %s25 = scalar_select %p22, %s23, %s24
      %p28 = pneg %p22
      %p29 = scmp.eq.s32.totalorder %s13, 1
      %p30 = por %p28, %p29
      %p31 = scmp.ne.s32.totalorder %s23, %s26
      %p32 = scmp.eq.s32.totalorder %s13, 0
      %p33 = por %p31, %p32
      %p34 = scmp.ne.s32.totalorder %s23, %s26
      %p35 = scmp.eq.s32.totalorder %s18, 1
      %p36 = por %p34, %p35
      %p37 = scmp.ne.s32.totalorder %s26, %s27
      %p38 = scmp.eq.s32.totalorder %s18, 0
      %p39 = por %p37, %p38
      %p40 = scmp.ne.s32.totalorder %s26, %s27
      %p41 = scmp.eq.s32.totalorder %s19, 1
      %p42 = por %p40, %p41
      %p44 = scmp.ne.s32.totalorder %s27, %s43
      %p45 = scmp.eq.s32.totalorder %s19, 0
      %p46 = por %p44, %p45
      %s47 = ssub.s32 %s13, %s20
      %p48 = scmp.eq.s32.totalorder %s47, 0
      %s50 = sadd.s32 %s49, 1
      %s51 = scalar_select %p48, %s49, %s50
      %p54 = pneg %p48
      %p55 = scmp.eq.s32.totalorder %s13, 1
      %p56 = por %p54, %p55
      %p57 = scmp.ne.s32.totalorder %s49, %s52
      %p58 = scmp.eq.s32.totalorder %s13, 0
      %p59 = por %p57, %p58
      %p60 = scmp.ne.s32.totalorder %s49, %s52
      %p61 = scmp.eq.s32.totalorder %s18, 1
      %p62 = por %p60, %p61
      %p63 = scmp.ne.s32.totalorder %s52, %s53
      %p64 = scmp.eq.s32.totalorder %s18, 0
      %p65 = por %p63, %p64
      %p66 = scmp.ne.s32.totalorder %s52, %s53
      %p67 = scmp.eq.s32.totalorder %s19, 1
      %p68 = por %p66, %p67
      %p70 = scmp.ne.s32.totalorder %s53, %s69
      %p71 = scmp.eq.s32.totalorder %s19, 0
      %p72 = por %p70, %p71
      %p73 = scmp.le.s32.totalorder 1, %s13
      %p74 = scmp.lt.s32.totalorder %s13, 3
      %p75 = pnand %p73, %p74
      %p76 = pneg %p75
      // Predicated region
      $region9: #{tpu_custom_call.1} parent=5 // pred_check
        _
      $region10: #{tpu_custom_call.1} parent=5 // pred_check_branch
        %78 = sbr.rel (%p75) target = $region12
      $region11: #{tpu_custom_call.1} parent=5 // pred_region
        %s79 = ssub.s32 %s13, 1
      $region12: #{tpu_custom_call.1} parent=5 // pred_fallthru
        _
      %p80 = scmp.lt.s32.totalorder %s13, 2
      // Predicated region
      $region13: #{tpu_custom_call.1} parent=5 // pred_check
        %p81 = pneg %p80
      $region14: #{tpu_custom_call.1} parent=5 // pred_check_branch
        %83 = sbr.rel (%p81) target = $region16
      $region15: #{tpu_custom_call.1} parent=5 // pred_region
        // Predicated region
        $region17: #{tpu_custom_call.1} parent=15 // pred_check
          %p84 = pneg %p33
        $region18: #{tpu_custom_call.1} parent=15 // pred_check_branch
          %86 = sbr.rel (%p84) target = $region20
        $region19: #{tpu_custom_call.1} parent=15 // pred_region
          %s87 = sand.u32 %s23, 1
          %s88 = scalar_lea.sflag [#allocation3], %s87
          %s89 = sand.u32 %s23, 1
          %s90 = smul.addr %s89, 16
          %s91 = scalar_lea.vmem [#allocation2], %s90
          %s93 = ssub.s32 256, 256
          %94 = vsyncadd %s88, %s93
          %s95 = smul.addr %s13, 2
          %s96 = smul.addr %s95, 128
          %s97 = scalar_lea.hbm %s0, %s96
          %s98 = sshll.u32 %s91, 4
          %s99 = int_to_ptr.vmem [resolvable:$true] %s98
          %104 = dma.hbm_to_vmem [thread:$0]  %s97, 256, %s99, %s88, 128, 128, 8
        $region20: #{tpu_custom_call.1} parent=15 // pred_fallthru
          _
      $region16: #{tpu_custom_call.1} parent=5 // pred_fallthru
        _
      %p105 = scmp.le.s32.totalorder 1, %s13
      %p106 = scmp.lt.s32.totalorder %s13, 3
      %p107 = pnand %p105, %p106
      %p108 = pneg %p107
      // Predicated region
      $region21: #{tpu_custom_call.1} parent=5 // pred_check
        _
      $region22: #{tpu_custom_call.1} parent=5 // pred_check_branch
        %110 = sbr.rel (%p107) target = $region24
      $region23: #{tpu_custom_call.1} parent=5 // pred_region
        %s111 = ssub.s32 %s13, 1
        %s112 = sand.u32 %s26, 1
        %s113 = scalar_lea.sflag [#allocation3], %s112
        %s114 = sand.u32 %s26, 1
        %s115 = smul.addr %s114, 16
        %s116 = scalar_lea.vmem [#allocation2], %s115
        // Predicated region
        $region25: #{tpu_custom_call.1} parent=23 // pred_check
          %p117 = pneg %p39
        $region26: #{tpu_custom_call.1} parent=23 // pred_check_branch
          %119 = sbr.rel (%p117) target = $region28
        $region27: #{tpu_custom_call.1} parent=23 // pred_region
          %120 = dma.done %s113, 256
        $region28: #{tpu_custom_call.1} parent=23 // pred_fallthru
          _
        %s121 = sand.u32 %s26, 1
        %s122 = scalar_lea.sflag [#allocation3], %s121
        %s123 = sand.u32 %s26, 1
        %s124 = smul.addr %s123, 16
        %s125 = scalar_lea.vmem [#allocation2], %s124
        %p126 = pneg %p39
        %p127 = pneg %p36
        %p128 = pneg %p65
        %p129 = pneg %p62
        %s130 = sand.u32 %s52, 1
        %s131 = scalar_lea.sflag [#allocation4], %s130
        %s132 = sand.u32 %s52, 1
        %s133 = smul.addr %s132, 16
        %s134 = scalar_lea.vmem [#allocation5], %s133
        %v135 = vld [vmem:[%s116] sm:$0xff]
        %v136 = vld [vmem:[%s116 + $0x8] sm:$0xff]
        %v137 = vmul.f32 %v135, 2.0
        %v138 = vmul.f32 %v136, 2.0
        %vm141 = vcmask 1046528
        %v142 = vrot.slane %v137, 1
        %v143 = vrot.slane %v138, 1
        %v144 = vsel %vm141, %v142, %v143
        %v147 = vadd.f32 %v135, %v144
        %v148 = vadd.f32 %v136, %v143
        %vm151 = vcmask 1045504
        %v152 = vrot.slane %v135, 2
        %v153 = vrot.slane %v136, 2
        %v154 = vsel %vm151, %v152, %v153
        %v157 = vadd.f32 %v147, %v154
        %v158 = vadd.f32 %v148, %v153
        %161 = vrot.lane.b32.xlu0 %v157, 126
        %v162 = vpop.permute.xlu0 %161
        %163 = vrot.lane.b32.xlu0 %v158, 126
        %v164 = vpop.permute.xlu0 %163
        %v167 = vsub.f32 %v157, %v162
        %v168 = vsub.f32 %v158, %v164
        %v169 = vsub.f32 %v135, %v154
        %v170 = vsub.f32 %v136, %v153
        %v171 = vmul.f32 %v169, 2.0
        %v172 = vmul.f32 %v170, 2.0
        %175 = vrot.lane.b32.xlu0 %v171, 127
        %v176 = vpop.permute.xlu0 %175
        %177 = vrot.lane.b32.xlu0 %v172, 127
        %v178 = vpop.permute.xlu0 %177
        %v181 = vadd.f32 %v169, %v176
        %v182 = vadd.f32 %v170, %v178
        %185 = vrot.lane.b32.xlu0 %v169, 126
        %v186 = vpop.permute.xlu0 %185
        %187 = vrot.lane.b32.xlu0 %v170, 126
        %v188 = vpop.permute.xlu0 %187
        %v191 = vadd.f32 %v181, %v186
        %v192 = vadd.f32 %v182, %v188
        %v193 = vmul.f32 %v167, %v167
        %v194 = vmul.f32 %v168, %v168
        %v195 = vmul.f32 %v191, %v191
        %v196 = vmul.f32 %v192, %v192
        %v197 = vadd.f32 %v193, %v195
        %v198 = vadd.f32 %v194, %v196
        %v199 = vrsqrt.pop %v197
        %v200 = vmul.f32 %v197, %v199
        %vm201 = vcmp.eq.f32.partialorder %v197, inf
        %v202 = vsel %vm201, %v197, %v200
        %vm203 = vcmp.eq.f32.partialorder %v197, 0.0
        %v204 = vand.u32 %v197, 2147483648
        %v205 = vsel %vm203, %v204, %v202
        %v206 = vrsqrt.pop %v198
        %v207 = vmul.f32 %v198, %v206
        %vm208 = vcmp.eq.f32.partialorder %v198, inf
        %v209 = vsel %vm208, %v198, %v207
        %vm210 = vcmp.eq.f32.partialorder %v198, 0.0
        %v211 = vand.u32 %v198, 2147483648
        %v212 = vsel %vm210, %v211, %v209
        %v213 = vmul.f32 %v205, 2.0
        %v214 = vmul.f32 %v212, 2.0
        %vm215 = vcmask 113664
        %216 = vst.msk [vmem:[%s134] sm:$0xff] %vm215, %v213
        %vm217 = vcmask 111616
        %218 = vst.msk [vmem:[%s134 + $0x8] sm:$0x3f] %vm217, %v214
        %s219 = sand.u32 %s52, 1
        %s220 = scalar_lea.sflag [#allocation4], %s219
        %s221 = sand.u32 %s52, 1
        %s222 = smul.addr %s221, 16
        %s223 = scalar_lea.vmem [#allocation5], %s222
        // Predicated region
        $region29: #{tpu_custom_call.1} parent=23 // pred_check
          %p224 = pneg %p62
        $region30: #{tpu_custom_call.1} parent=23 // pred_check_branch
          %226 = sbr.rel (%p224) target = $region32
        $region31: #{tpu_custom_call.1} parent=23 // pred_region
          %s228 = ssub.s32 256, 256
          %229 = vsyncadd %s220, %s228
          %s230 = smul.addr %s18, 2
          %s231 = smul.addr %s230, 128
          %s232 = scalar_lea.hbm %s1, %s231
          %s233 = sshll.u32 %s223, 4
          %s234 = int_to_ptr.vmem [resolvable:$true] %s233
          %239 = dma.vmem_to_hbm [thread:$0]  %s234, 256, %s232, %s220, 128, 128, 8
        $region32: #{tpu_custom_call.1} parent=23 // pred_fallthru
          _
      $region24: #{tpu_custom_call.1} parent=5 // pred_fallthru
        _
      %p240 = scmp.le.s32.totalorder 2, %s13
      // Predicated region
      $region33: #{tpu_custom_call.1} parent=5 // pred_check
        %p241 = pneg %p240
      $region34: #{tpu_custom_call.1} parent=5 // pred_check_branch
        %243 = sbr.rel (%p241) target = $region36
      $region35: #{tpu_custom_call.1} parent=5 // pred_region
        %s244 = ssub.s32 %s13, 2
        // Predicated region
        $region37: #{tpu_custom_call.1} parent=35 // pred_check
          %p245 = pneg %p68
        $region38: #{tpu_custom_call.1} parent=35 // pred_check_branch
          %247 = sbr.rel (%p245) target = $region40
        $region39: #{tpu_custom_call.1} parent=35 // pred_region
          %s248 = sand.u32 %s53, 1
          %s249 = scalar_lea.sflag [#allocation4], %s248
          %s250 = sand.u32 %s53, 1
          %s251 = smul.addr %s250, 16
          %s252 = scalar_lea.vmem [#allocation5], %s251
          %253 = dma.done %s249, 256
        $region40: #{tpu_custom_call.1} parent=35 // pred_fallthru
          _
      $region36: #{tpu_custom_call.1} parent=5 // pred_fallthru
        _
    $region6: #{tpu_custom_call.1} parent=1 // loop_footer
      %s17 = sadd.s32 1, %s13
    $region7: #{tpu_custom_call.1} parent=1 // loop_footer_branch
      %12 = sbr.rel target = $region3
    $region8: #{tpu_custom_call.1} parent=1 // loop_exit
      _
    %254 = vsyncpa [#allocation3], 1
    %s255 = scalar_lea.sflag [#allocation3], 1
    %256 = vsyncpa %s255, 1
    %257 = vsyncpa [#allocation4], 1
    %s258 = scalar_lea.sflag [#allocation4], 1
    %259 = vsyncpa %s258, 1

</llo_original>
